<compile_context>
chip_gen: v7x
topology: tpu7x:2x2x1
jax: 0.10.0
libtpu: 0.0.40
codegen_flags: <defaults>
</compile_context>

<pallas_src>
import jax
import jax.numpy as jnp
from jax.experimental import pallas as pl
from jax.experimental.pallas import tpu as pltpu


def _round_up(x, m):
    return ((x + m - 1) // m) * m


def _attention_kernel(x_ref, w_ref, len_ref, rep_ref, attn_ref,
                      m_sc, d_sc, acc_sc, s_sc):
    # Grid: (num_batch_tiles, num_L_tiles); L is the last ("arbitrary") axis.
    # x_ref:    (Bb, Tl, H)  f32   input tile (unpadded H, unpadded L unless tiled)
    # w_ref:    (1, H)       f32   attention weight vector
    # len_ref:  (Bb, 1)      i32   valid sequence lengths
    # rep_ref:  (Bb, H)      f32   output, resident across the L axis
    # attn_ref: (Bb, Lp)     f32   output (full L), resident across the L axis
    # scratch:  m_sc (Bb,1) running max, d_sc (Bb,1) running masked denominator,
    #           acc_sc (Bb,H) un-normalized rep, s_sc (Bb,Lp) raw relu scores.
    li = pl.program_id(1)
    nl = pl.num_programs(1)
    Bb, Tl, H = x_ref.shape
    Lp = s_sc.shape[1]

    @pl.when(li == 0)
    def _init():
        # relu scores are >= 0, so 0 is a valid floor for the running max.
        m_sc[...] = jnp.zeros_like(m_sc)
        d_sc[...] = jnp.zeros_like(d_sc)
        acc_sc[...] = jnp.zeros_like(acc_sc)

    x = x_ref[...]                                   # (Bb, Tl, H)
    lens = len_ref[...]                              # (Bb, 1) i32

    # scores = relu(x @ w^T) on the MXU: (Bb,1,H) x (Bb,Tl,H) -> (Bb,1,Tl).
    # No (Bb,Tl,H) elementwise temporary, no XLU lane reduction.
    wb = jnp.broadcast_to(w_ref[...].reshape(1, 1, H), (Bb, 1, H))
    s = jax.lax.dot_general(
        wb, x, dimension_numbers=(((2,), (2,)), ((0,), (0,))),
        preferred_element_type=jnp.float32)[:, 0, :]
    s = jnp.maximum(s, 0.0)                          # (Bb, Tl)

    # Stash raw scores so the final attention is emitted in one lane-dense pass.
    if Lp == Tl:                                     # single-L-tile fast path
        s_sc[...] = s
    else:
        off = pl.multiple_of(li * Tl, Tl)
        s_sc[:, pl.ds(off, Tl)] = s

    # Online softmax with the length mask fused into the running denominator
    # (algebraically identical to softmax -> mask -> renormalize).
    col = jax.lax.broadcasted_iota(jnp.int32, (Bb, Tl), 1) + li * Tl
    m_prev = m_sc[...]
    m_new = jnp.maximum(m_prev, jnp.max(s, axis=-1, keepdims=True))
    alpha = jnp.exp(m_prev - m_new)
    e = jnp.where(col < lens, jnp.exp(s - m_new), 0.0)
    d_sc[...] = alpha * d_sc[...] + jnp.sum(e, axis=-1, keepdims=True)
    # partial rep: (Bb,1,Tl) x (Bb,Tl,H) -> (Bb,1,H) on the MXU.
    part = jax.lax.dot_general(
        e[:, None, :], x, dimension_numbers=(((2,), (1,)), ((0,), (0,))),
        preferred_element_type=jnp.float32)[:, 0, :]
    acc_sc[...] = alpha * acc_sc[...] + part
    m_sc[...] = m_new

    @pl.when(li == nl - 1)
    def _finalize():
        # Exact reciprocal (approx=True would leave ~1e-3 relative error in the
        # softmax normalization; cost of exact is negligible here).
        inv = pl.reciprocal(d_sc[...], approx=False)
        rep_ref[...] = (acc_sc[...] * inv).astype(rep_ref.dtype)
        col_all = jax.lax.broadcasted_iota(jnp.int32, (Bb, Lp), 1)
        e_all = jnp.where(col_all < lens, jnp.exp(s_sc[...] - m_sc[...]), 0.0)
        attn_ref[...] = (e_all * inv).astype(attn_ref.dtype)
        # NOTE: a true length of 0 gives denominator 0 -> inf/NaN, matching the
        # PyTorch reference's divide-by-zero behavior.


def _choose_tiling(B, L, H):
    """Pick (Bb, Bp, Tl, Lp, vmem_limit) valid on v5e / v6e / v7x."""
    itemsize = 4
    try:
        vmem_phys = pltpu.get_tpu_info().vmem_capacity_bytes
    except Exception:
        vmem_phys = 64 * 1024 * 1024             # conservative (v7x per-core)
    # Scoped limit: v5e/v6e -> 96 MiB, v7x (64 MiB physical) -> 48 MiB.
    vmem_limit = int(min(vmem_phys * 3 // 4, 96 * 1024 * 1024))
    x_budget = vmem_limit // 2                   # double-buffered x gets half;
                                                 # rest: outputs/scratch/temps
    target_stage = 4 * 1024 * 1024               # ~HBM-roofline-saturating stage

    row_bytes = L * H * itemsize                 # one batch row, full L

    # --- L tiling decision ---------------------------------------------------
    # Keep the full (unpadded) L per tile whenever an 8-row double-buffered
    # stage stays small; otherwise tile L (online softmax) so tiny batches
    # still pipeline and v7x's 48 MiB scoped VMEM is respected.
    if 8 * 2 * row_bytes <= min(x_budget, 4 * target_stage) and (
            B >= 32 or B * row_bytes <= 2 * target_stage):
        Tl, Lp = L, L                            # no L padding at all
    else:
        tl = target_stage // (8 * 2 * H * itemsize)
        Tl = max(128, (tl // 128) * 128)         # lane-aligned L tiles
        Tl = min(Tl, _round_up(L, 128))
        Lp = _round_up(L, Tl)                    # waste <= Tl-1 rows of a big L
    # TODO(synk): an additionally H-tiled accumulation would be needed for
    # extreme H (8 rows of one 128-wide L tile not fitting x_budget); not
    # relevant for this module's hidden sizes.

    # --- batch tiling ----------------------------------------------------------
    tile_row_bytes = Tl * H * itemsize
    bb_vmem = max(8, (x_budget // (2 * tile_row_bytes)) // 8 * 8)
    bb_stage = max(8, (target_stage // (2 * tile_row_bytes)) // 8 * 8)
    # 512 bounds the number of per-batch MXU matmul instances inside one tile.
    bb_cap = min(bb_vmem, bb_stage, 512)
    # Keep >=4 batch grid steps when there is enough work (v7x megacore
    # sharding + DMA/compute overlap on every generation).
    if B >= 32 and B * row_bytes >= target_stage:
        bb_cap = min(bb_cap, max(8, (_round_up(B, 8) // 4) // 8 * 8))

    if B <= bb_cap:
        Bb, Bp = B, B                            # single batch tile, no padding
    else:
        # Balanced split with padding waste bounded to <8 rows per tile.
        n0 = -(-B // bb_cap)
        best_bb, best_bp = None, None
        for n in range(n0, n0 + 4):
            bb = _round_up(-(-B // n), 8)
            bp = n * bb
            if best_bp is None or bp < best_bp:
                best_bb, best_bp = bb, bp
        Bb, Bp = best_bb, best_bp

    return Bb, Bp, Tl, Lp, vmem_limit


def attention_forward(inputs, lengths, att_weights):
    """inputs: (B, L, H) f32; lengths: (B,) int; att_weights: (1, H) f32.

    Returns (representations (B, H) f32, attentions (B, L) f32).
    """
    B, L, H = inputs.shape
    Bb, Bp, Tl, Lp, vmem_limit = _choose_tiling(B, L, H)

    x = inputs.astype(jnp.float32)
    lens = lengths.astype(jnp.int32)
    if Bp > B or Lp > L:
        # Only pad when the batch must be split or L is tiled; padded rows are
        # zero / fully-masked and sliced off below.
        x = jnp.pad(x, ((0, Bp - B), (0, Lp - L), (0, 0)))
    if Bp > B:
        # Padded batch rows get length = Lp so they normalize cleanly (no NaNs).
        lens = jnp.pad(lens, (0, Bp - B), constant_values=max(Lp, 1))
    lens = lens.reshape(Bp, 1)
    w = att_weights.astype(jnp.float32).reshape(1, H)

    rep, attn = pl.pallas_call(
        _attention_kernel,
        out_shape=(
            jax.ShapeDtypeStruct((Bp, H), jnp.float32),
            jax.ShapeDtypeStruct((Bp, Lp), jnp.float32),
        ),
        grid=(Bp // Bb, Lp // Tl),
        in_specs=[
            pl.BlockSpec((Bb, Tl, H), lambda b, l: (b, l, 0)),
            pl.BlockSpec((1, H), lambda b, l: (0, 0)),
            pl.BlockSpec((Bb, 1), lambda b, l: (b, 0)),
        ],
        out_specs=(
            pl.BlockSpec((Bb, H), lambda b, l: (b, 0)),
            pl.BlockSpec((Bb, Lp), lambda b, l: (b, 0)),
        ),
        scratch_shapes=[
            pltpu.VMEM((Bb, 1), jnp.float32),    # running max
            pltpu.VMEM((Bb, 1), jnp.float32),    # running masked denominator
            pltpu.VMEM((Bb, H), jnp.float32),    # un-normalized rep accumulator
            pltpu.VMEM((Bb, Lp), jnp.float32),   # raw relu scores
        ],
        compiler_params=pltpu.CompilerParams(
            dimension_semantics=("parallel", "arbitrary"),
            vmem_limit_bytes=vmem_limit,
        ),
    )(x, w, lens)

    if Bp > B:
        rep = rep[:B]
    if Bp > B or Lp > L:
        attn = attn[:B, :L]
    return rep, attn


if __name__ == "__main__":
    def reference(inputs, lengths, att_weights):
        # Pure-JAX transcription of the PyTorch module's forward pass.
        _, L, _ = inputs.shape
        scores = jnp.maximum(jnp.einsum("blh,h->bl", inputs, att_weights[0]), 0.0)
        soft = jax.nn.softmax(scores, axis=-1)
        valid = (jnp.arange(L)[None, :] < lengths[:, None]).astype(jnp.float32)
        masked = soft * valid
        attn = masked / jnp.sum(masked, axis=-1, keepdims=True)
        rep = jnp.sum(inputs * attn[:, :, None], axis=1)
        return rep, attn

    key = jax.random.PRNGKey(0)
    k_x, k_w, k_x2, k_w2 = jax.random.split(key, 4)

    # --- primary test: module-scale shapes (batch=2, seq=8, hidden=32) ------
    B, L, H = 2, 8, 32
    inputs = jax.random.normal(k_x, (B, L, H), dtype=jnp.float32)
    stdv = 1.0 / (H ** 0.5)   # nn.init.uniform_(-stdv, stdv), stdv = 1/sqrt(H)
    att_weights = jax.random.uniform(k_w, (1, H), jnp.float32, -stdv, stdv)
    lengths = jnp.array([L, 5], dtype=jnp.int32)

    rep, attn = attention_forward(inputs, lengths, att_weights)
    jax.block_until_ready((rep, attn))
    rep_exp, attn_exp = reference(inputs, lengths, att_weights)
    assert jnp.allclose(attn, attn_exp, rtol=1e-2, atol=1e-3), "attn mismatch (small)"
    assert jnp.allclose(rep, rep_exp, rtol=1e-2, atol=1e-3), "rep mismatch (small)"

    # --- secondary test: exercises the L-tiled online-softmax path ----------
    B2, L2, H2 = 4, 4096, 128
    inputs2 = jax.random.normal(k_x2, (B2, L2, H2), dtype=jnp.float32)
    stdv2 = 1.0 / (H2 ** 0.5)
    att_weights2 = jax.random.uniform(k_w2, (1, H2), jnp.float32, -stdv2, stdv2)
    lengths2 = jnp.array([L2, 1000, 3000, 37], dtype=jnp.int32)

    rep2, attn2 = attention_forward(inputs2, lengths2, att_weights2)
    jax.block_until_ready((rep2, attn2))
    rep2_exp, attn2_exp = reference(inputs2, lengths2, att_weights2)
    assert jnp.allclose(attn2, attn2_exp, rtol=1e-2, atol=1e-4), "attn mismatch (tiled)"
    assert jnp.allclose(rep2, rep2_exp, rtol=1e-2, atol=1e-3), "rep mismatch (tiled)"

    print("KERNEL_OK")
</pallas_src>

<mosaic_0001>
module attributes {stable_mosaic.version = 11 : i64} {
  func.func @_attention_kernel(%arg0: i32, %arg1: i32, %arg2: memref<2x8x32xf32, #tpu.memory_space<vmem>>, %arg3: memref<1x32xf32, #tpu.memory_space<vmem>>, %arg4: memref<2x1xi32, #tpu.memory_space<vmem>>, %arg5: memref<2x32xf32, #tpu.memory_space<vmem>>, %arg6: memref<2x8xf32, #tpu.memory_space<vmem>>, %arg7: memref<2x1xf32, #tpu.memory_space<vmem>>, %arg8: memref<2x1xf32, #tpu.memory_space<vmem>>, %arg9: memref<2x32xf32, #tpu.memory_space<vmem>>, %arg10: memref<2x8xf32, #tpu.memory_space<vmem>>) attributes {dimension_semantics = [#tpu.dimension_semantics<parallel>, #tpu.dimension_semantics<arbitrary>], iteration_bounds = array<i64: 1, 1>, scalar_prefetch = 0 : i64, scratch_operands = 4 : i64, tpu.core_type = #tpu.core_type<tc>, window_params = [{transform_indices = @transform_0, window_bounds = array<i64: 2, 8, 32>}, {pipeline_mode = #tpu.pipeline_mode<synchronous>, transform_indices = @transform_1, window_bounds = array<i64: 1, 32>}, {transform_indices = @transform_2, window_bounds = array<i64: 2, 1>}, {transform_indices = @transform_3, window_bounds = array<i64: 2, 32>}, {transform_indices = @transform_4, window_bounds = array<i64: 2, 8>}]} {
    %c0_i32 = arith.constant 0 : i32
    %0 = arith.cmpi eq, %arg1, %c0_i32 : i32
    %1 = arith.extui %0 : i1 to i32
    %c0_i32_0 = arith.constant 0 : i32
    %2 = arith.cmpi ne, %1, %c0_i32_0 : i32
    scf.if %2 {
      %cst_28 = arith.constant 0.000000e+00 : f32
      %49 = vector.broadcast %cst_28 : f32 to vector<2x1xf32>
      %c0_29 = arith.constant 0 : index
      %c0_30 = arith.constant 0 : index
      %50 = vector.load %arg7[%c0_29, %c0_30] : memref<2x1xf32, #tpu.memory_space<vmem>>, vector<2x1xf32>
      tpu.vector_store %arg7[%c0_29, %c0_30], %49 {strides = array<i32>} : memref<2x1xf32, #tpu.memory_space<vmem>>, vector<2x1xf32>,
      %cst_31 = arith.constant 0.000000e+00 : f32
      %51 = vector.broadcast %cst_31 : f32 to vector<2x1xf32>
      %c0_32 = arith.constant 0 : index
      %c0_33 = arith.constant 0 : index
      %52 = vector.load %arg8[%c0_32, %c0_33] : memref<2x1xf32, #tpu.memory_space<vmem>>, vector<2x1xf32>
      tpu.vector_store %arg8[%c0_32, %c0_33], %51 {strides = array<i32>} : memref<2x1xf32, #tpu.memory_space<vmem>>, vector<2x1xf32>,
      %cst_34 = arith.constant 0.000000e+00 : f32
      %53 = vector.broadcast %cst_34 : f32 to vector<2x32xf32>
      %c0_35 = arith.constant 0 : index
      %c0_36 = arith.constant 0 : index
      %54 = vector.load %arg9[%c0_35, %c0_36] : memref<2x32xf32, #tpu.memory_space<vmem>>, vector<2x32xf32>
      tpu.vector_store %arg9[%c0_35, %c0_36], %53 {strides = array<i32>} : memref<2x32xf32, #tpu.memory_space<vmem>>, vector<2x32xf32>,
    } else {
    }
    %c0 = arith.constant 0 : index
    %c0_1 = arith.constant 0 : index
    %c0_2 = arith.constant 0 : index
    %3 = vector.load %arg2[%c0, %c0_1, %c0_2] : memref<2x8x32xf32, #tpu.memory_space<vmem>>, vector<2x8x32xf32>
    %c0_3 = arith.constant 0 : index
    %c0_4 = arith.constant 0 : index
    %4 = vector.load %arg4[%c0_3, %c0_4] : memref<2x1xi32, #tpu.memory_space<vmem>>, vector<2x1xi32>
    %c0_5 = arith.constant 0 : index
    %c0_6 = arith.constant 0 : index
    %5 = vector.load %arg3[%c0_5, %c0_6] : memref<1x32xf32, #tpu.memory_space<vmem>>, vector<1x32xf32>
    %6 = vector.shape_cast %5 : vector<1x32xf32> to vector<1x1x32xf32>
    %7 = vector.shape_cast %6 : vector<1x1x32xf32> to vector<1x1x32xf32>
    %8 = vector.broadcast %7 : vector<1x1x32xf32> to vector<2x1x32xf32>
    %cst = arith.constant dense<0.000000e+00> : vector<2x1x8xf32>
    %9 = tpu.matmul %8, %3, %cst {dimension_numbers = #tpu.dot_dimension_numbers<[2], [2], [1], [1], [0, 0, 0, 1, 1, 1], [0], [0]>} : vector<2x1x32xf32>, vector<2x8x32xf32>, vector<2x1x8xf32> -> vector<2x1x8xf32>
    %10 = vector.shape_cast %9 : vector<2x1x8xf32> to vector<2x8xf32>
    %cst_7 = arith.constant 0.000000e+00 : f32
    %11 = vector.broadcast %cst_7 : f32 to vector<2x8xf32>
    %12 = arith.maximumf %10, %11 : vector<2x8xf32>
    %c0_8 = arith.constant 0 : index
    %c0_9 = arith.constant 0 : index
    %13 = vector.load %arg10[%c0_8, %c0_9] : memref<2x8xf32, #tpu.memory_space<vmem>>, vector<2x8xf32>
    tpu.vector_store %arg10[%c0_8, %c0_9], %12 {strides = array<i32>} : memref<2x8xf32, #tpu.memory_space<vmem>>, vector<2x8xf32>,
    %14 = tpu.iota {dimensions = array<i32: 1>} : vector<2x8xi32>
    %c8_i32 = arith.constant 8 : i32
    %15 = arith.muli %arg1, %c8_i32 : i32
    %16 = vector.broadcast %15 : i32 to vector<2x8xi32>
    %17 = arith.addi %14, %16 : vector<2x8xi32>
    %c0_10 = arith.constant 0 : index
    %c0_11 = arith.constant 0 : index
    %18 = vector.load %arg7[%c0_10, %c0_11] : memref<2x1xf32, #tpu.memory_space<vmem>>, vector<2x1xf32>
    %cst_12 = arith.constant dense<0xFF800000> : vector<2xf32>
    %19 = vector.multi_reduction <maximumf>, %12, %cst_12 [1] : vector<2x8xf32> to vector<2xf32>
    %20 = vector.shape_cast %19 : vector<2xf32> to vector<2x1xf32>
    %21 = arith.maximumf %18, %20 : vector<2x1xf32>
    %22 = arith.subf %18, %21 : vector<2x1xf32>
    %23 = math.exp %22 : vector<2x1xf32>
    %24 = vector.broadcast %4 : vector<2x1xi32> to vector<2x8xi32>
    %25 = arith.cmpi slt, %17, %24 : vector<2x8xi32>
    %26 = vector.broadcast %21 : vector<2x1xf32> to vector<2x8xf32>
    %27 = arith.subf %12, %26 : vector<2x8xf32>
    %28 = math.exp %27 : vector<2x8xf32>
    %cst_13 = arith.constant 0.000000e+00 : f32
    %29 = vector.broadcast %cst_13 : f32 to vector<2x8xf32>
    %30 = arith.select %25, %28, %29 : vector<2x8xi1>, vector<2x8xf32>
    %c0_14 = arith.constant 0 : index
    %c0_15 = arith.constant 0 : index
    %31 = vector.load %arg8[%c0_14, %c0_15] : memref<2x1xf32, #tpu.memory_space<vmem>>, vector<2x1xf32>
    %32 = arith.mulf %23, %31 : vector<2x1xf32>
    %cst_16 = arith.constant dense<0.000000e+00> : vector<2xf32>
    %33 = vector.multi_reduction <add>, %30, %cst_16 [1] : vector<2x8xf32> to vector<2xf32>
    %34 = vector.shape_cast %33 : vector<2xf32> to vector<2x1xf32>
    %35 = arith.addf %32, %34 : vector<2x1xf32>
    %c0_17 = arith.constant 0 : index
    %c0_18 = arith.constant 0 : index
    %36 = vector.load %arg8[%c0_17, %c0_18] : memref<2x1xf32, #tpu.memory_space<vmem>>, vector<2x1xf32>
    tpu.vector_store %arg8[%c0_17, %c0_18], %35 {strides = array<i32>} : memref<2x1xf32, #tpu.memory_space<vmem>>, vector<2x1xf32>,
    %37 = vector.shape_cast %30 : vector<2x8xf32> to vector<2x1x8xf32>
    %cst_19 = arith.constant dense<0.000000e+00> : vector<2x1x32xf32>
    %38 = tpu.matmul %37, %3, %cst_19 {dimension_numbers = #tpu.dot_dimension_numbers<[2], [1], [1], [2], [0, 0, 0, 1, 1, 2], [0], [0]>} : vector<2x1x8xf32>, vector<2x8x32xf32>, vector<2x1x32xf32> -> vector<2x1x32xf32>
    %39 = vector.shape_cast %38 : vector<2x1x32xf32> to vector<2x32xf32>
    %c0_20 = arith.constant 0 : index
    %c0_21 = arith.constant 0 : index
    %40 = vector.load %arg9[%c0_20, %c0_21] : memref<2x32xf32, #tpu.memory_space<vmem>>, vector<2x32xf32>
    %41 = vector.broadcast %23 : vector<2x1xf32> to vector<2x32xf32>
    %42 = arith.mulf %41, %40 : vector<2x32xf32>
    %43 = arith.addf %42, %39 : vector<2x32xf32>
    %c0_22 = arith.constant 0 : index
    %c0_23 = arith.constant 0 : index
    %44 = vector.load %arg9[%c0_22, %c0_23] : memref<2x32xf32, #tpu.memory_space<vmem>>, vector<2x32xf32>
    tpu.vector_store %arg9[%c0_22, %c0_23], %43 {strides = array<i32>} : memref<2x32xf32, #tpu.memory_space<vmem>>, vector<2x32xf32>,
    %c0_24 = arith.constant 0 : index
    %c0_25 = arith.constant 0 : index
    %45 = vector.load %arg7[%c0_24, %c0_25] : memref<2x1xf32, #tpu.memory_space<vmem>>, vector<2x1xf32>
    tpu.vector_store %arg7[%c0_24, %c0_25], %21 {strides = array<i32>} : memref<2x1xf32, #tpu.memory_space<vmem>>, vector<2x1xf32>,
    %c0_i32_26 = arith.constant 0 : i32
    %46 = arith.cmpi eq, %arg1, %c0_i32_26 : i32
    %47 = arith.extui %46 : i1 to i32
    %c0_i32_27 = arith.constant 0 : i32
    %48 = arith.cmpi ne, %47, %c0_i32_27 : i32
    scf.if %48 {
      %c0_28 = arith.constant 0 : index
      %c0_29 = arith.constant 0 : index
      %49 = vector.load %arg8[%c0_28, %c0_29] : memref<2x1xf32, #tpu.memory_space<vmem>>, vector<2x1xf32>
      %50 = tpu.reciprocal %49 : vector<2x1xf32> -> vector<2x1xf32>
      %c0_30 = arith.constant 0 : index
      %c0_31 = arith.constant 0 : index
      %51 = vector.load %arg9[%c0_30, %c0_31] : memref<2x32xf32, #tpu.memory_space<vmem>>, vector<2x32xf32>
      %52 = vector.broadcast %50 : vector<2x1xf32> to vector<2x32xf32>
      %53 = arith.mulf %51, %52 : vector<2x32xf32>
      %c0_32 = arith.constant 0 : index
      %c0_33 = arith.constant 0 : index
      %54 = vector.load %arg5[%c0_32, %c0_33] : memref<2x32xf32, #tpu.memory_space<vmem>>, vector<2x32xf32>
      tpu.vector_store %arg5[%c0_32, %c0_33], %53 {strides = array<i32>} : memref<2x32xf32, #tpu.memory_space<vmem>>, vector<2x32xf32>,
      %55 = tpu.iota {dimensions = array<i32: 1>} : vector<2x8xi32>
      %56 = vector.broadcast %4 : vector<2x1xi32> to vector<2x8xi32>
      %57 = arith.cmpi slt, %55, %56 : vector<2x8xi32>
      %c0_34 = arith.constant 0 : index
      %c0_35 = arith.constant 0 : index
      %58 = vector.load %arg10[%c0_34, %c0_35] : memref<2x8xf32, #tpu.memory_space<vmem>>, vector<2x8xf32>
      %c0_36 = arith.constant 0 : index
      %c0_37 = arith.constant 0 : index
      %59 = vector.load %arg7[%c0_36, %c0_37] : memref<2x1xf32, #tpu.memory_space<vmem>>, vector<2x1xf32>
      %60 = vector.broadcast %59 : vector<2x1xf32> to vector<2x8xf32>
      %61 = arith.subf %58, %60 : vector<2x8xf32>
      %62 = math.exp %61 : vector<2x8xf32>
      %cst_38 = arith.constant 0.000000e+00 : f32
      %63 = vector.broadcast %cst_38 : f32 to vector<2x8xf32>
      %64 = arith.select %57, %62, %63 : vector<2x8xi1>, vector<2x8xf32>
      %65 = vector.broadcast %50 : vector<2x1xf32> to vector<2x8xf32>
      %66 = arith.mulf %64, %65 : vector<2x8xf32>
      %c0_39 = arith.constant 0 : index
      %c0_40 = arith.constant 0 : index
      %67 = vector.load %arg6[%c0_39, %c0_40] : memref<2x8xf32, #tpu.memory_space<vmem>>, vector<2x8xf32>
      tpu.vector_store %arg6[%c0_39, %c0_40], %66 {strides = array<i32>} : memref<2x8xf32, #tpu.memory_space<vmem>>, vector<2x8xf32>,
    } else {
    }
    return
  }
  func.func @transform_0(%arg0: i32, %arg1: i32) -> (i32, i32, i32) {
    %c0_i32 = arith.constant 0 : i32
    %c0_i32_0 = arith.constant 0 : i32
    return %arg0, %arg1, %c0_i32 : i32, i32, i32
  }
  func.func @transform_1(%arg0: i32, %arg1: i32) -> (i32, i32) {
    %c0_i32 = arith.constant 0 : i32
    %c0_i32_0 = arith.constant 0 : i32
    %c0_i32_1 = arith.constant 0 : i32
    return %c0_i32, %c0_i32_0 : i32, i32
  }
  func.func @transform_2(%arg0: i32, %arg1: i32) -> (i32, i32) {
    %c0_i32 = arith.constant 0 : i32
    %c0_i32_0 = arith.constant 0 : i32
    return %arg0, %c0_i32 : i32, i32
  }
  func.func @transform_3(%arg0: i32, %arg1: i32) -> (i32, i32) {
    %c0_i32 = arith.constant 0 : i32
    %c0_i32_0 = arith.constant 0 : i32
    return %arg0, %c0_i32 : i32, i32
  }
  func.func @transform_4(%arg0: i32, %arg1: i32) -> (i32, i32) {
    %c0_i32 = arith.constant 0 : i32
    %c0_i32_0 = arith.constant 0 : i32
    return %arg0, %c0_i32 : i32, i32
  }
}

</mosaic_0001>

<llo_original>
// kernel: tpu_custom_call.1
$region0: #{tpu_custom_call.1}
  #allocation0 [shape = 'u32[]', space=smem, size = 0x4, offset = 0x4, fixed_abs, tag = 'smem constant byte address 0x4 - core index']
  #allocation1 [shape = 'u32[144,128]{1,0:T(1,128)}', space=vmem, size = 0x12000, scoped, tag = 'internal scratch']
  #allocation2 [shape = 'f32[2,1]{1,0:T(2,128)}', space=vmem, size = 0x400, scoped, tag = 'scratch operand']
  #allocation3 [shape = 'f32[2,1]{1,0:T(2,128)}', space=vmem, size = 0x400, scoped, tag = 'scratch operand']
  #allocation4 [shape = 'f32[2,32]{1,0:T(2,128)}', space=vmem, size = 0x400, scoped, tag = 'scratch operand']
  #allocation5 [shape = 'f32[2,8]{1,0:T(2,128)}', space=vmem, size = 0x400, scoped, tag = 'scratch operand']
  %s0 = inlined_call_operand.hbm [shape: f32[2,8,32], index: 0, kind: input, shape index: {}]
  %s1 = inlined_call_operand.vmem [shape: f32[1,32], index: 1, kind: input, shape index: {}]
  %s2 = inlined_call_operand.vmem [shape: s32[2,1], index: 2, kind: input, shape index: {}]
  %s3 = inlined_call_operand.hbm [shape: f32[2,32], index: 3, kind: output, shape index: {0}]
  %s4 = inlined_call_operand.hbm [shape: f32[2,8], index: 4, kind: output, shape index: {1}]
  %5 = xla_tuple %s3, %s4
  %s6 = sld [smem:[#allocation0]]
  $region42: #{tpu_custom_call.1} parent=0
    _
  %s8 = ssub.s32 1, %s6
  %s9 = scalar_select 0, %s8, %s6
  $region1: #{tpu_custom_call.1} parent=0
    #allocation6 [shape = 'u8[8192]{0}', space=vmem, size = 0x2000, scoped, tag = 'input window, operand 0, single buffered']
    #allocation7 [shape = 's32[1]{0}', space=sflag, size = 0x4, scoped, tag = 'scoped memory for tpu_custom_call.1']
    #allocation8 [shape = 's32[1]{0}', space=sflag, size = 0x4, scoped, tag = 'scoped memory for tpu_custom_call.1']
    #allocation9 [shape = 'u8[1024]{0}', space=vmem, size = 0x400, scoped, tag = 'output window, operand 0, single buffered']
    #allocation10 [shape = 'u8[1024]{0}', space=vmem, size = 0x400, scoped, tag = 'output window, operand 1, single buffered']
    #allocation11 [shape = 's32[1]{0}', space=sflag, size = 0x4, scoped, tag = 'scoped memory for tpu_custom_call.1']
    %10 = vsyncpa [#allocation7], 0
    %11 = vsyncpa [#allocation8], 0
    %12 = vsyncpa [#allocation11], 0
    // Predicated region
    $region2: #{tpu_custom_call.1} parent=1 // pred_check
      _
    $region3: #{tpu_custom_call.1} parent=1 // pred_check_branch
      %14 = sbr.rel (0) target = $region5
    $region4: #{tpu_custom_call.1} parent=1 // pred_region
      %s16 = ssub.s32 256, 256
      %17 = vsyncadd [#allocation7], %s16
      %s18 = sshll.u32 [#allocation6], 4
      %s19 = int_to_ptr.vmem [resolvable:$true] %s18
      %24 = dma.hbm_to_vmem [thread:$0]  %s0, 256, %s19, [#allocation7], 128, 128, 8
    $region5: #{tpu_custom_call.1} parent=1 // pred_fallthru
      _
    // Predicated region
    $region6: #{tpu_custom_call.1} parent=1 // pred_check
      _
    $region7: #{tpu_custom_call.1} parent=1 // pred_check_branch
      %26 = sbr.rel (0) target = $region9
    $region8: #{tpu_custom_call.1} parent=1 // pred_region
      _
    $region9: #{tpu_custom_call.1} parent=1 // pred_fallthru
      _
    // Predicated region
    $region10: #{tpu_custom_call.1} parent=1 // pred_check
      _
    $region11: #{tpu_custom_call.1} parent=1 // pred_check_branch
      %28 = sbr.rel (0) target = $region13
    $region12: #{tpu_custom_call.1} parent=1 // pred_region
      _
    $region13: #{tpu_custom_call.1} parent=1 // pred_fallthru
      _
    // Predicated region
    $region14: #{tpu_custom_call.1} parent=1 // pred_check
      _
    $region15: #{tpu_custom_call.1} parent=1 // pred_check_branch
      %30 = sbr.rel (0) target = $region17
    $region16: #{tpu_custom_call.1} parent=1 // pred_region
      %31 = dma.done [#allocation7], 256
    $region17: #{tpu_custom_call.1} parent=1 // pred_fallthru
      _
    %p32 = scmp.eq.s32.totalorder 0, 0
    // Predicated region
    $region18: #{tpu_custom_call.1} parent=1 // pred_check
      %p33 = pneg %p32
    $region19: #{tpu_custom_call.1} parent=1 // pred_check_branch
      %35 = sbr.rel (%p33) target = $region21
    $region20: #{tpu_custom_call.1} parent=1 // pred_region
      %vm36 = vcmask 1024
      %37 = vst.msk [vmem:[#allocation2] sm:$0x3] %vm36, 0.0
      %38 = vst.msk [vmem:[#allocation3] sm:$0x3] %vm36, 0.0
      %vm39 = vcmask 254976
      %40 = vst.msk [vmem:[#allocation4] sm:$0x3] %vm39, 0.0
    $region21: #{tpu_custom_call.1} parent=1 // pred_fallthru
      _
    %v41 = vld [vmem:[#allocation6] sm:$0xff]
    %v42 = vld [vmem:[#allocation6 + $0x8] sm:$0xff]
    %v43 = vld [vmem:[%s2] sm:$0x3]
    %v44 = vld [vmem:[%s1] sm:$0x1]
    %vm45 = vcmask 261120
    %v47 = vsel %vm45, %v44, 0
    %v50 = vsel %vm45, %v41, 0
    %52 = vmatprep.subr.mxu0 0.0
    %53 = vmatpush1.xpose.msra.mxu0 %v50
    %54 = vmatprep.subr.mxu0 0.0
    %55 = vmatpush1.xpose.msra.mxu0 0.0
    %56 = vmatprep.subr.mxu0 0.0
    %57 = vmatpush1.xpose.msra.mxu0 0.0
    %58 = vmatprep.subr.mxu0 0.0
    %59 = vmatpush1.xpose.msra.mxu0 0.0
    %60 = vmatprep.subr.mxu0 0.0
    %61 = vmatpush1.xpose.msra.mxu0 0.0
    %62 = vmatprep.subr.mxu0 0.0
    %63 = vmatpush1.xpose.msra.mxu0 0.0
    %64 = vmatprep.subr.mxu0 0.0
    %65 = vmatpush1.xpose.msra.mxu0 0.0
    %66 = vmatprep.subr.mxu0 0.0
    %67 = vmatpush1.xpose.msra.mxu0 0.0
    %68 = vmatprep.subr.mxu0 0.0
    %69 = vmatpush1.xpose.msra.mxu0 0.0
    %70 = vmatprep.subr.mxu0 0.0
    %71 = vmatpush1.xpose.msra.mxu0 0.0
    %72 = vmatprep.subr.mxu0 0.0
    %73 = vmatpush1.xpose.msra.mxu0 0.0
    %74 = vmatprep.subr.mxu0 0.0
    %75 = vmatpush1.xpose.msra.mxu0 0.0
    %76 = vmatprep.subr.mxu0 0.0
    %77 = vmatpush1.xpose.msra.mxu0 0.0
    %78 = vmatprep.subr.mxu0 0.0
    %79 = vmatpush1.xpose.msra.mxu0 0.0
    %80 = vmatprep.subr.mxu0 0.0
    %81 = vmatpush1.xpose.msra.mxu0 0.0
    %82 = vmatprep.subr.mxu0 0.0
    %83 = vmatpush1.xpose.msra.mxu0 0.0
    %84 = vmatprep.subr.mxu0 0.0
    %85 = vmatpush1.xpose.msra.mxu0 0.0
    %86 = vmatprep.subr.mxu0 0.0
    %87 = vmatpush1.xpose.msra.mxu0 0.0
    %88 = vmatprep.subr.mxu0 0.0
    %89 = vmatpush1.xpose.msra.mxu0 0.0
    %90 = vmatprep.subr.mxu0 0.0
    %91 = vmatpush1.xpose.msra.mxu0 0.0
    %92 = vmatprep.subr.mxu0 0.0
    %93 = vmatpush1.xpose.msra.mxu0 0.0
    %94 = vmatprep.subr.mxu0 0.0
    %95 = vmatpush1.xpose.msra.mxu0 0.0
    %96 = vmatprep.subr.mxu0 0.0
    %97 = vmatpush1.xpose.msra.mxu0 0.0
    %98 = vmatprep.subr.mxu0 0.0
    %99 = vmatpush1.xpose.msra.mxu0 0.0
    %100 = vmatprep.subr.mxu0 0.0
    %101 = vmatpush1.xpose.msra.mxu0 0.0
    %102 = vmatprep.subr.mxu0 0.0
    %103 = vmatpush1.xpose.msra.mxu0 0.0
    %104 = vmatprep.subr.mxu0 0.0
    %105 = vmatpush1.xpose.msra.mxu0 0.0
    %106 = vmatprep.subr.mxu0 0.0
    %107 = vmatpush1.xpose.msra.mxu0 0.0
    %108 = vmatprep.subr.mxu0 0.0
    %109 = vmatpush1.xpose.msra.mxu0 0.0
    %110 = vmatprep.subr.mxu0 0.0
    %111 = vmatpush1.xpose.msra.mxu0 0.0
    %112 = vmatprep.subr.mxu0 0.0
    %113 = vmatpush1.xpose.msra.mxu0 0.0
    %114 = vmatprep.subr.mxu0 0.0
    %115 = vmatpush1.xpose.msra.mxu0 0.0
    %116 = vmatprep.mubr.f32.mxu0 0.0
    %117 = vmatmul.mubr.f32.gmra.mrb[0].mxu0 %v47
    %v118 = vpop.f32.mrb[0].mxu0
    %v119 = vadd.f32 0.0, %v118
    %v120 = vpop.f32.mrb[0].mxu0
    %121 = vdwg.mxu0
    %v123 = vsel %vm45, %v42, 0
    %125 = vmatprep.subr.mxu0 0.0
    %126 = vmatpush1.xpose.msra.mxu0 %v123
    %127 = vmatprep.subr.mxu0 0.0
    %128 = vmatpush1.xpose.msra.mxu0 0.0
    %129 = vmatprep.subr.mxu0 0.0
    %130 = vmatpush1.xpose.msra.mxu0 0.0
    %131 = vmatprep.subr.mxu0 0.0
    %132 = vmatpush1.xpose.msra.mxu0 0.0
    %133 = vmatprep.subr.mxu0 0.0
    %134 = vmatpush1.xpose.msra.mxu0 0.0
    %135 = vmatprep.subr.mxu0 0.0
    %136 = vmatpush1.xpose.msra.mxu0 0.0
    %137 = vmatprep.subr.mxu0 0.0
    %138 = vmatpush1.xpose.msra.mxu0 0.0
    %139 = vmatprep.subr.mxu0 0.0
    %140 = vmatpush1.xpose.msra.mxu0 0.0
    %141 = vmatprep.subr.mxu0 0.0
    %142 = vmatpush1.xpose.msra.mxu0 0.0
    %143 = vmatprep.subr.mxu0 0.0
    %144 = vmatpush1.xpose.msra.mxu0 0.0
    %145 = vmatprep.subr.mxu0 0.0
    %146 = vmatpush1.xpose.msra.mxu0 0.0
    %147 = vmatprep.subr.mxu0 0.0
    %148 = vmatpush1.xpose.msra.mxu0 0.0
    %149 = vmatprep.subr.mxu0 0.0
    %150 = vmatpush1.xpose.msra.mxu0 0.0
    %151 = vmatprep.subr.mxu0 0.0
    %152 = vmatpush1.xpose.msra.mxu0 0.0
    %153 = vmatprep.subr.mxu0 0.0
    %154 = vmatpush1.xpose.msra.mxu0 0.0
    %155 = vmatprep.subr.mxu0 0.0
    %156 = vmatpush1.xpose.msra.mxu0 0.0
    %157 = vmatprep.subr.mxu0 0.0
    %158 = vmatpush1.xpose.msra.mxu0 0.0
    %159 = vmatprep.subr.mxu0 0.0
    %160 = vmatpush1.xpose.msra.mxu0 0.0
    %161 = vmatprep.subr.mxu0 0.0
    %162 = vmatpush1.xpose.msra.mxu0 0.0
    %163 = vmatprep.subr.mxu0 0.0
    %164 = vmatpush1.xpose.msra.mxu0 0.0
    %165 = vmatprep.subr.mxu0 0.0
    %166 = vmatpush1.xpose.msra.mxu0 0.0
    %167 = vmatprep.subr.mxu0 0.0
    %168 = vmatpush1.xpose.msra.mxu0 0.0
    %169 = vmatprep.subr.mxu0 0.0
    %170 = vmatpush1.xpose.msra.mxu0 0.0
    %171 = vmatprep.subr.mxu0 0.0
    %172 = vmatpush1.xpose.msra.mxu0 0.0
    %173 = vmatprep.subr.mxu0 0.0
    %174 = vmatpush1.xpose.msra.mxu0 0.0
    %175 = vmatprep.subr.mxu0 0.0
    %176 = vmatpush1.xpose.msra.mxu0 0.0
    %177 = vmatprep.subr.mxu0 0.0
    %178 = vmatpush1.xpose.msra.mxu0 0.0
    %179 = vmatprep.subr.mxu0 0.0
    %180 = vmatpush1.xpose.msra.mxu0 0.0
    %181 = vmatprep.subr.mxu0 0.0
    %182 = vmatpush1.xpose.msra.mxu0 0.0
    %183 = vmatprep.subr.mxu0 0.0
    %184 = vmatpush1.xpose.msra.mxu0 0.0
    %185 = vmatprep.subr.mxu0 0.0
    %186 = vmatpush1.xpose.msra.mxu0 0.0
    %187 = vmatprep.subr.mxu0 0.0
    %188 = vmatpush1.xpose.msra.mxu0 0.0
    %189 = vmatprep.mubr.f32.mxu0 0.0
    %190 = vmatmul.mubr.f32.gmra.mrb[0].mxu0 %v47
    %v191 = vpop.f32.mrb[0].mxu0
    %v192 = vadd.f32 0.0, %v191
    %v193 = vpop.f32.mrb[0].mxu0
    %194 = vdwg.mxu0
    %v195 = vmax.f32 %v119, 0.0
    %v196 = vmax.f32 %v192, 0.0
    %v199 = vrot.slane %v196, 7
    %vm200 = vcmask 1041409
    %v201 = vsel %vm200, %v199, %v195
    %vm203 = vcmask 58368
    %204 = vst.msk [vmem:[#allocation5] sm:$0x3] %vm203, %v201
    %v205 = vlaneseq
    %v206 = vand.u32 %v205, 127
    %s207 = smul.u32 0, 8
    %v208 = vstv %s207
    %v209 = vadd.s32 %v206, %v208
    %v210 = vld [vmem:[#allocation2] sm:$0x3]
    %v211 = vsel %vm203, %v201, -inf
    %212 = vmax.xlane.f32.xlu0 %v211
    %v213 = vpop.xlane.xlu0 %212
    %v214 = vmax.f32 %v210, %v213
    %v215 = vsub.f32 %v210, %v214
    %v216 = vmul.f32 %v215, 1.442695
    %v217 = vpow.pop %v216
    %218 = vset.pattern.permute.xlu0 0
    %219 = vperm.xlu0 %218, %v43
    %v220 = vpop.permute.xlu0 %219
    %vm221 = vcmp.lt.s32.totalorder %v209, %v220
    %223 = vset.pattern.permute.xlu0 0
    %224 = vperm.xlu0 %223, %v214
    %v225 = vpop.permute.xlu0 %224
    %v226 = vrot.slane %v225, 1
    %v229 = vsub.f32 %v195, %v225
    %v230 = vsub.f32 %v196, %v226
    %v231 = vmul.f32 %v229, 1.442695
    %v232 = vpow.pop %v231
    %v233 = vmul.f32 %v230, 1.442695
    %v234 = vpow.pop %v233
    %v237 = vrot.slane %v234, 7
    %v238 = vsel %vm200, %v237, %v232
    %v240 = vsel %vm221, %v238, 0.0
    %v241 = vld [vmem:[#allocation3] sm:$0x3]
    %v242 = vmul.f32 %v217, %v241
    %v243 = vsel %vm203, %v240, 0.0
    %244 = vadd.xlane.f32.xlu0 %v243
    %v245 = vpop.xlane.xlu0 %244
    %v246 = vadd.f32 %v242, %v245
    %vm247 = vcmask 1024
    %248 = vst.msk [vmem:[#allocation3] sm:$0x3] %vm247, %v246
    %v251 = vunpack.c.l.s4 1966171168
    %v252 = vunpack.c.0.s8 %v251
    %v253 = vlaneseq
    %v254 = vshrl.u32 %v253, 7
    %v255 = vsub.s32 %v252, %v254
    %v256 = vrot.slane %v240, %v255
    %v257 = vcombine.high %v256, %v256
    %v259 = vunpack.c.l.s4 1966171168
    %v260 = vunpack.c.0.s8 %v259
    %v261 = vlaneseq
    %v262 = vshrl.u32 %v261, 7
    %v263 = vsub.s32 %v260, %v262
    %v264 = vrot.slane %v256, %v263
    %v266 = vunpack.c.l.s4 1966171168
    %v267 = vunpack.c.0.s8 %v266
    %v268 = vlaneseq
    %v269 = vshrl.u32 %v268, 7
    %v270 = vsub.s32 %v267, %v269
    %v271 = vrot.slane %v257, %v270
    %vm272 = vcmask 64512
    %v273 = vsel %vm272, %v264, 0
    %275 = vmatprep.subr.mxu0 0.0
    %276 = vmatpush1.msra.mxu0 %v41
    %277 = vmatprep.subr.mxu0 0.0
    %278 = vmatpush1.msra.mxu0 0.0
    %279 = vmatprep.subr.mxu0 0.0
    %280 = vmatpush1.msra.mxu0 0.0
    %281 = vmatprep.subr.mxu0 0.0
    %282 = vmatpush1.msra.mxu0 0.0
    %283 = vmatprep.subr.mxu0 0.0
    %284 = vmatpush1.msra.mxu0 0.0
    %285 = vmatprep.subr.mxu0 0.0
    %286 = vmatpush1.msra.mxu0 0.0
    %287 = vmatprep.subr.mxu0 0.0
    %288 = vmatpush1.msra.mxu0 0.0
    %289 = vmatprep.subr.mxu0 0.0
    %290 = vmatpush1.msra.mxu0 0.0
    %291 = vmatprep.subr.mxu0 0.0
    %292 = vmatpush1.msra.mxu0 0.0
    %293 = vmatprep.subr.mxu0 0.0
    %294 = vmatpush1.msra.mxu0 0.0
    %295 = vmatprep.subr.mxu0 0.0
    %296 = vmatpush1.msra.mxu0 0.0
    %297 = vmatprep.subr.mxu0 0.0
    %298 = vmatpush1.msra.mxu0 0.0
    %299 = vmatprep.subr.mxu0 0.0
    %300 = vmatpush1.msra.mxu0 0.0
    %301 = vmatprep.subr.mxu0 0.0
    %302 = vmatpush1.msra.mxu0 0.0
    %303 = vmatprep.subr.mxu0 0.0
    %304 = vmatpush1.msra.mxu0 0.0
    %305 = vmatprep.subr.mxu0 0.0
    %306 = vmatpush1.msra.mxu0 0.0
    %307 = vmatprep.subr.mxu0 0.0
    %308 = vmatpush1.msra.mxu0 0.0
    %309 = vmatprep.subr.mxu0 0.0
    %310 = vmatpush1.msra.mxu0 0.0
    %311 = vmatprep.subr.mxu0 0.0
    %312 = vmatpush1.msra.mxu0 0.0
    %313 = vmatprep.subr.mxu0 0.0
    %314 = vmatpush1.msra.mxu0 0.0
    %315 = vmatprep.subr.mxu0 0.0
    %316 = vmatpush1.msra.mxu0 0.0
    %317 = vmatprep.subr.mxu0 0.0
    %318 = vmatpush1.msra.mxu0 0.0
    %319 = vmatprep.subr.mxu0 0.0
    %320 = vmatpush1.msra.mxu0 0.0
    %321 = vmatprep.subr.mxu0 0.0
    %322 = vmatpush1.msra.mxu0 0.0
    %323 = vmatprep.subr.mxu0 0.0
    %324 = vmatpush1.msra.mxu0 0.0
    %325 = vmatprep.subr.mxu0 0.0
    %326 = vmatpush1.msra.mxu0 0.0
    %327 = vmatprep.subr.mxu0 0.0
    %328 = vmatpush1.msra.mxu0 0.0
    %329 = vmatprep.subr.mxu0 0.0
    %330 = vmatpush1.msra.mxu0 0.0
    %331 = vmatprep.subr.mxu0 0.0
    %332 = vmatpush1.msra.mxu0 0.0
    %333 = vmatprep.subr.mxu0 0.0
    %334 = vmatpush1.msra.mxu0 0.0
    %335 = vmatprep.subr.mxu0 0.0
    %336 = vmatpush1.msra.mxu0 0.0
    %337 = vmatprep.subr.mxu0 0.0
    %338 = vmatpush1.msra.mxu0 0.0
    %339 = vmatprep.mubr.f32.mxu0 0.0
    %340 = vmatmul.mubr.f32.gmra.mrb[0].mxu0 %v273
    %v341 = vpop.f32.mrb[0].mxu0
    %v342 = vadd.f32 0.0, %v341
    %v343 = vpop.f32.mrb[0].mxu0
    %344 = vdwg.mxu0
    %v345 = vsel %vm272, %v271, 0
    %347 = vmatprep.subr.mxu0 0.0
    %348 = vmatpush1.msra.mxu0 %v42
    %349 = vmatprep.subr.mxu0 0.0
    %350 = vmatpush1.msra.mxu0 0.0
    %351 = vmatprep.subr.mxu0 0.0
    %352 = vmatpush1.msra.mxu0 0.0
    %353 = vmatprep.subr.mxu0 0.0
    %354 = vmatpush1.msra.mxu0 0.0
    %355 = vmatprep.subr.mxu0 0.0
    %356 = vmatpush1.msra.mxu0 0.0
    %357 = vmatprep.subr.mxu0 0.0
    %358 = vmatpush1.msra.mxu0 0.0
    %359 = vmatprep.subr.mxu0 0.0
    %360 = vmatpush1.msra.mxu0 0.0
    %361 = vmatprep.subr.mxu0 0.0
    %362 = vmatpush1.msra.mxu0 0.0
    %363 = vmatprep.subr.mxu0 0.0
    %364 = vmatpush1.msra.mxu0 0.0
    %365 = vmatprep.subr.mxu0 0.0
    %366 = vmatpush1.msra.mxu0 0.0
    %367 = vmatprep.subr.mxu0 0.0
    %368 = vmatpush1.msra.mxu0 0.0
    %369 = vmatprep.subr.mxu0 0.0
    %370 = vmatpush1.msra.mxu0 0.0
    %371 = vmatprep.subr.mxu0 0.0
    %372 = vmatpush1.msra.mxu0 0.0
    %373 = vmatprep.subr.mxu0 0.0
    %374 = vmatpush1.msra.mxu0 0.0
    %375 = vmatprep.subr.mxu0 0.0
    %376 = vmatpush1.msra.mxu0 0.0
    %377 = vmatprep.subr.mxu0 0.0
    %378 = vmatpush1.msra.mxu0 0.0
    %379 = vmatprep.subr.mxu0 0.0
    %380 = vmatpush1.msra.mxu0 0.0
    %381 = vmatprep.subr.mxu0 0.0
    %382 = vmatpush1.msra.mxu0 0.0
    %383 = vmatprep.subr.mxu0 0.0
    %384 = vmatpush1.msra.mxu0 0.0
    %385 = vmatprep.subr.mxu0 0.0
    %386 = vmatpush1.msra.mxu0 0.0
    %387 = vmatprep.subr.mxu0 0.0
    %388 = vmatpush1.msra.mxu0 0.0
    %389 = vmatprep.subr.mxu0 0.0
    %390 = vmatpush1.msra.mxu0 0.0
    %391 = vmatprep.subr.mxu0 0.0
    %392 = vmatpush1.msra.mxu0 0.0
    %393 = vmatprep.subr.mxu0 0.0
    %394 = vmatpush1.msra.mxu0 0.0
    %395 = vmatprep.subr.mxu0 0.0
    %396 = vmatpush1.msra.mxu0 0.0
    %397 = vmatprep.subr.mxu0 0.0
    %398 = vmatpush1.msra.mxu0 0.0
    %399 = vmatprep.subr.mxu0 0.0
    %400 = vmatpush1.msra.mxu0 0.0
    %401 = vmatprep.subr.mxu0 0.0
    %402 = vmatpush1.msra.mxu0 0.0
    %403 = vmatprep.subr.mxu0 0.0
    %404 = vmatpush1.msra.mxu0 0.0
    %405 = vmatprep.subr.mxu0 0.0
    %406 = vmatpush1.msra.mxu0 0.0
    %407 = vmatprep.subr.mxu0 0.0
    %408 = vmatpush1.msra.mxu0 0.0
    %409 = vmatprep.subr.mxu0 0.0
    %410 = vmatpush1.msra.mxu0 0.0
    %411 = vmatprep.mubr.f32.mxu0 0.0
    %412 = vmatmul.mubr.f32.gmra.mrb[0].mxu0 %v345
    %v413 = vpop.f32.mrb[0].mxu0
    %v414 = vadd.f32 0.0, %v413
    %v415 = vpop.f32.mrb[0].mxu0
    %416 = vdwg.mxu0
    %v417 = vld [vmem:[#allocation4] sm:$0x3]
    %419 = vset.pattern.permute.xlu0 0
    %420 = vperm.xlu0 %419, %v217
    %v421 = vpop.permute.xlu0 %420
    %v423 = vmul.f32 %v421, %v417
    %v426 = vrot.slane %v414, 7
    %v427 = vsel %vm200, %v426, %v342
    %v429 = vadd.f32 %v423, %v427
    %vm430 = vcmask 254976
    %431 = vst.msk [vmem:[#allocation4] sm:$0x3] %vm430, %v429
    %432 = vst.msk [vmem:[#allocation2] sm:$0x3] %vm247, %v214
    // Predicated region
    $region22: #{tpu_custom_call.1} parent=1 // pred_check
      %p433 = pneg %p32
    $region23: #{tpu_custom_call.1} parent=1 // pred_check_branch
      %435 = sbr.rel (%p433) target = $region25
    $region24: #{tpu_custom_call.1} parent=1 // pred_region
      %v436 = vld [vmem:[#allocation3] sm:$0x3]
      %v437 = vrcp.pop %v436
      %v438 = vld [vmem:[#allocation4] sm:$0x3]
      %440 = vset.pattern.permute.xlu0 0
      %441 = vperm.xlu0 %440, %v437
      %v442 = vpop.permute.xlu0 %441
      %v444 = vmul.f32 %v438, %v442
      %445 = vst.msk [vmem:[#allocation9] sm:$0x3] %vm430, %v444
      %vm446 = vcmp.lt.s32.totalorder %v206, %v220
      %v447 = vld [vmem:[#allocation5] sm:$0x3]
      %v448 = vld [vmem:[#allocation2] sm:$0x3]
      %450 = vset.pattern.permute.xlu0 0
      %451 = vperm.xlu0 %450, %v448
      %v452 = vpop.permute.xlu0 %451
      %v454 = vsub.f32 %v447, %v452
      %v455 = vmul.f32 %v454, 1.442695
      %v456 = vpow.pop %v455
      %v457 = vsel %vm446, %v456, 0.0
      %v458 = vmul.f32 %v457, %v442
      %459 = vst.msk [vmem:[#allocation10] sm:$0x3] %vm203, %v458
    $region25: #{tpu_custom_call.1} parent=1 // pred_fallthru
      _
    // Predicated region
    $region26: #{tpu_custom_call.1} parent=1 // pred_check
      _
    $region27: #{tpu_custom_call.1} parent=1 // pred_check_branch
      %461 = sbr.rel (0) target = $region29
    $region28: #{tpu_custom_call.1} parent=1 // pred_region
      %s463 = ssub.s32 32, 32
      %464 = vsyncadd [#allocation8], %s463
      %s466 = sshll.u32 [#allocation9], 4
      %s467 = int_to_ptr.vmem [resolvable:$true] %s466
      %469 = dma.vmem_to_hbm [thread:$0]  %s467, 32, %s3, [#allocation8]
    $region29: #{tpu_custom_call.1} parent=1 // pred_fallthru
      _
    // Predicated region
    $region30: #{tpu_custom_call.1} parent=1 // pred_check
      _
    $region31: #{tpu_custom_call.1} parent=1 // pred_check_branch
      %471 = sbr.rel (0) target = $region33
    $region32: #{tpu_custom_call.1} parent=1 // pred_region
      %s473 = ssub.s32 32, 32
      %474 = vsyncadd [#allocation11], %s473
      %s476 = sshll.u32 [#allocation10], 4
      %s477 = int_to_ptr.vmem [resolvable:$true] %s476
      %479 = dma.vmem_to_hbm [thread:$0]  %s477, 32, %s4, [#allocation11]
    $region33: #{tpu_custom_call.1} parent=1 // pred_fallthru
      _
    // Predicated region
    $region34: #{tpu_custom_call.1} parent=1 // pred_check
      _
    $region35: #{tpu_custom_call.1} parent=1 // pred_check_branch
      %481 = sbr.rel (0) target = $region37
    $region36: #{tpu_custom_call.1} parent=1 // pred_region
      %482 = dma.done [#allocation8], 32
    $region37: #{tpu_custom_call.1} parent=1 // pred_fallthru
      _
    // Predicated region
    $region38: #{tpu_custom_call.1} parent=1 // pred_check
      _
    $region39: #{tpu_custom_call.1} parent=1 // pred_check_branch
      %484 = sbr.rel (0) target = $region41
    $region40: #{tpu_custom_call.1} parent=1 // pred_region
      %485 = dma.done [#allocation11], 32
    $region41: #{tpu_custom_call.1} parent=1 // pred_fallthru
      _
    %486 = vsyncpa [#allocation7], 1
    %487 = vsyncpa [#allocation8], 1
    %488 = vsyncpa [#allocation11], 1

</llo_original>
